<compile_context>
chip_gen: v7x
topology: tpu7x:2x2x1
jax: 0.10.0
libtpu: 0.0.40
codegen_flags: <defaults>
</compile_context>

<pallas_src>
import functools

import jax
import jax.numpy as jnp
from jax.experimental import pallas as pl
from jax.experimental.pallas import tpu as pltpu


def _round_up(x, m):
    return (x + m - 1) // m * m


def _choose_token_tile(batch, n_tokens):
    """Pick the token tile TQ.

    Prefers lane-dense (multiple-of-128) tiles of 256-512; falls back to the
    full token extent for small / unaligned N. Never drops below 256 for large
    N, but tries to keep >= 4 total grid steps so both v7x TensorCores get work.
    """
    if n_tokens < 256 or n_tokens % 128 != 0:
        if n_tokens <= 512:
            return n_tokens          # single full-extent block per batch item
        tq = 512
    else:
        tq = min(512, n_tokens)
    while tq > 256 and batch * ((n_tokens + tq - 1) // tq) < 4:
        tq //= 2
    return tq


def _decoder_linear_kernel(x_ref, w_ref, b_ref, o_ref, *, compute_dtype):
    # x_ref: (TQ, C)   w_ref: (C, Kp)   b_ref: (1, Kp)   o_ref: (Kp, TQ)
    x = x_ref[...].astype(compute_dtype)
    w = w_ref[...].astype(compute_dtype)
    acc = jnp.dot(x, w, preferred_element_type=jnp.float32)     # (TQ, Kp) f32
    acc = acc + b_ref[...].astype(jnp.float32)
    # Transpose on the XLU (free slack in a memory-bound kernel); token dim
    # lands in lanes so the store is lane-dense.
    o_ref[...] = acc.T.astype(o_ref.dtype)                      # (Kp, TQ)


def prepare_params(params, *, compute_dtype=jnp.bfloat16):
    """One-time parameter prep: pad n_cls to a multiple of 128, cast to bf16.

    params: {"w": (d_encoder, n_cls)  (= W_pt.T), "b": (n_cls,)}
    """
    w, bias = params["w"], params["b"]
    C, n_cls = w.shape
    Kp = _round_up(n_cls, 128)
    w_p = jnp.zeros((C, Kp), compute_dtype).at[:, :n_cls].set(
        w.astype(compute_dtype))
    b_p = jnp.zeros((1, Kp), jnp.float32).at[0, :n_cls].set(
        bias.astype(jnp.float32))
    return {"w": w_p, "b": b_p, "n_cls": n_cls}


def decoder_linear_forward(x, prepared, im_size, patch_size, *,
                           out_dtype=jnp.bfloat16):
    """Pallas DecoderLinear forward.

    x: (B, N, d_encoder) patch tokens (ideally already bf16 from the encoder).
    prepared: output of `prepare_params`.
    Returns (B, n_cls, GS, GW) in `out_dtype`.
    """
    H, W = im_size
    GS = H // patch_size
    B, N, C = x.shape
    GW = N // GS
    w_p, b_p, n_cls = prepared["w"], prepared["b"], prepared["n_cls"]
    Kp = w_p.shape[1]
    compute_dtype = w_p.dtype

    TQ = _choose_token_tile(B, N)
    n_tiles = pl.cdiv(N, TQ)

    kernel = functools.partial(_decoder_linear_kernel,
                               compute_dtype=compute_dtype)

    flops = 2 * B * N * C * Kp
    bytes_accessed = (x.size * x.dtype.itemsize
                      + w_p.size * w_p.dtype.itemsize
                      + b_p.size * b_p.dtype.itemsize
                      + B * Kp * N * jnp.dtype(out_dtype).itemsize)

    out = pl.pallas_call(
        kernel,
        out_shape=jax.ShapeDtypeStruct((B, Kp, N), out_dtype),
        grid_spec=pltpu.PrefetchScalarGridSpec(
            num_scalar_prefetch=0,
            grid=(B, n_tiles),
            in_specs=[
                # x token tile; batch dim squeezed out of the kernel ref.
                pl.BlockSpec((None, TQ, C), lambda b, t: (b, t, 0)),
                # weight / bias: grid-invariant.
                pl.BlockSpec((C, Kp), lambda b, t: (0, 0)),
                pl.BlockSpec((1, Kp), lambda b, t: (0, 0)),
            ],
            # Output written pre-transposed: (B, Kp, N) with TQ in lanes.
            out_specs=pl.BlockSpec((None, Kp, TQ), lambda b, t: (b, 0, t)),
        ),
        compiler_params=pltpu.CompilerParams(
            dimension_semantics=("parallel", "parallel")),
        cost_estimate=pl.CostEstimate(flops=flops, transcendentals=0,
                                      bytes_accessed=bytes_accessed),
    )(x, w_p, b_p)

    # Drop class padding; 'b c (h w) -> b c h w' is now a pure reshape
    # (no transpose pass).
    return out[:, :n_cls, :].reshape(B, n_cls, GS, GW)


def decoder_linear_reference(x, params, im_size, patch_size):
    """Pure-JAX f32 reference mirroring the PyTorch forward."""
    H, W = im_size
    GS = H // patch_size
    B, N, C = x.shape
    n_cls = params["w"].shape[1]
    y = (x.astype(jnp.float32) @ params["w"].astype(jnp.float32)
         + params["b"].astype(jnp.float32))
    GW = N // GS
    return y.reshape(B, GS, GW, n_cls).transpose(0, 3, 1, 2)


def init_params(key, d_encoder, n_cls):
    # trunc_normal_(std=0.02) approximated with a normal draw; bias = 0
    # (matches init_weights: nn.init.constant_(m.bias, 0)).
    kw, = jax.random.split(key, 1)
    return {
        "w": 0.02 * jax.random.normal(kw, (d_encoder, n_cls), jnp.float32),
        "b": jnp.zeros((n_cls,), jnp.float32),
    }


if __name__ == "__main__":
    B, d_encoder, n_cls, patch_size = 2, 32, 10, 4
    H = W = 16
    GS, GW = H // patch_size, W // patch_size
    N = GS * GW                               # 16 patch tokens

    key = jax.random.PRNGKey(0)
    kx, kp = jax.random.split(key)
    # Upstream encoder is assumed to emit bf16; build the demo input as bf16
    # directly (no extra wrapper-side cast pass inside the forward).
    x = jax.random.normal(kx, (B, N, d_encoder), jnp.float32).astype(jnp.bfloat16)
    params = init_params(kp, d_encoder, n_cls)
    prepared = prepare_params(params)          # one-time weight pad + cast

    out = decoder_linear_forward(x, prepared, (H, W), patch_size)
    out = jax.block_until_ready(out)

    ref = decoder_linear_reference(x, params, (H, W), patch_size)
    assert out.shape == (B, n_cls, GS, GW), out.shape
    # bf16 operands / bf16 output with f32 accumulation vs f32 reference.
    assert jnp.allclose(out.astype(jnp.float32), ref, atol=2e-2, rtol=2e-2), \
        "mismatch vs reference"

    print("KERNEL_OK")
</pallas_src>

<mosaic_0001>
module attributes {stable_mosaic.version = 11 : i64} {
  func.func @_decoder_linear_kernel(%arg0: i32, %arg1: i32, %arg2: memref<1x16x32xbf16, #tpu.memory_space<vmem>>, %arg3: memref<32x128xbf16, #tpu.memory_space<vmem>>, %arg4: memref<1x128xf32, #tpu.memory_space<vmem>>, %arg5: memref<1x128x16xbf16, #tpu.memory_space<vmem>>) attributes {dimension_semantics = [#tpu.dimension_semantics<parallel>, #tpu.dimension_semantics<parallel>], iteration_bounds = array<i64: 2, 1>, scalar_prefetch = 0 : i64, scratch_operands = 0 : i64, tpu.core_type = #tpu.core_type<tc>, window_params = [{transform_indices = @transform_0, window_bounds = array<i64: 1, 16, 32>}, {pipeline_mode = #tpu.pipeline_mode<synchronous>, transform_indices = @transform_1, window_bounds = array<i64: 32, 128>}, {pipeline_mode = #tpu.pipeline_mode<synchronous>, transform_indices = @transform_2, window_bounds = array<i64: 1, 128>}, {transform_indices = @transform_3, window_bounds = array<i64: 1, 128, 16>}]} {
    %c0 = arith.constant 0 : index
    %c0_0 = arith.constant 0 : index
    %c0_1 = arith.constant 0 : index
    %0 = vector.load %arg2[%c0, %c0_0, %c0_1] : memref<1x16x32xbf16, #tpu.memory_space<vmem>>, vector<1x16x32xbf16>
    %1 = vector.shape_cast %0 : vector<1x16x32xbf16> to vector<16x32xbf16>
    %c0_2 = arith.constant 0 : index
    %c0_3 = arith.constant 0 : index
    %2 = vector.load %arg3[%c0_2, %c0_3] : memref<32x128xbf16, #tpu.memory_space<vmem>>, vector<32x128xbf16>
    %cst = arith.constant dense<0.000000e+00> : vector<16x128xf32>
    %3 = tpu.matmul %1, %2, %cst {dimension_numbers = #tpu.dot_dimension_numbers<[1], [0], [0], [1], [0, 0, 1, 1], [], []>} : vector<16x32xbf16>, vector<32x128xbf16>, vector<16x128xf32> -> vector<16x128xf32>
    %c0_4 = arith.constant 0 : index
    %c0_5 = arith.constant 0 : index
    %4 = vector.load %arg4[%c0_4, %c0_5] : memref<1x128xf32, #tpu.memory_space<vmem>>, vector<1x128xf32>
    %5 = vector.broadcast %4 : vector<1x128xf32> to vector<16x128xf32>
    %6 = arith.addf %3, %5 : vector<16x128xf32>
    %7 = tpu.transpose %6, [1, 0] : vector<16x128xf32> -> vector<128x16xf32>
    %8 = arith.truncf %7 : vector<128x16xf32> to vector<128x16xbf16>
    %c0_6 = arith.constant 0 : index
    %c0_7 = arith.constant 0 : index
    %c0_8 = arith.constant 0 : index
    %9 = vector.load %arg5[%c0_6, %c0_7, %c0_8] : memref<1x128x16xbf16, #tpu.memory_space<vmem>>, vector<1x128x16xbf16>
    %10 = vector.shape_cast %9 : vector<1x128x16xbf16> to vector<128x16xbf16>
    %11 = vector.shape_cast %8 : vector<128x16xbf16> to vector<1x128x16xbf16>
    tpu.vector_store %arg5[%c0_6, %c0_7, %c0_8], %11 {strides = array<i32>} : memref<1x128x16xbf16, #tpu.memory_space<vmem>>, vector<1x128x16xbf16>,
    return
  }
  func.func @transform_0(%arg0: i32, %arg1: i32) -> (i32, i32, i32) {
    %c0_i32 = arith.constant 0 : i32
    %c0_i32_0 = arith.constant 0 : i32
    return %arg0, %arg1, %c0_i32 : i32, i32, i32
  }
  func.func @transform_1(%arg0: i32, %arg1: i32) -> (i32, i32) {
    %c0_i32 = arith.constant 0 : i32
    %c0_i32_0 = arith.constant 0 : i32
    %c0_i32_1 = arith.constant 0 : i32
    return %c0_i32, %c0_i32_0 : i32, i32
  }
  func.func @transform_2(%arg0: i32, %arg1: i32) -> (i32, i32) {
    %c0_i32 = arith.constant 0 : i32
    %c0_i32_0 = arith.constant 0 : i32
    %c0_i32_1 = arith.constant 0 : i32
    return %c0_i32, %c0_i32_0 : i32, i32
  }
  func.func @transform_3(%arg0: i32, %arg1: i32) -> (i32, i32, i32) {
    %c0_i32 = arith.constant 0 : i32
    %c0_i32_0 = arith.constant 0 : i32
    return %arg0, %c0_i32, %arg1 : i32, i32, i32
  }
}

</mosaic_0001>

<llo_original>
// kernel: tpu_custom_call.1
$region0: #{tpu_custom_call.1}
  #allocation0 [shape = 'u32[]', space=smem, size = 0x4, offset = 0x4, fixed_abs, tag = 'smem constant byte address 0x4 - core index']
  #allocation1 [shape = 'u32[144,128]{1,0:T(1,128)}', space=vmem, size = 0x12000, scoped, tag = 'internal scratch']
  %s0 = inlined_call_operand.hbm [shape: bf16[2,16,32], index: 0, kind: input, shape index: {}]
  %s1 = inlined_call_operand.hbm [shape: bf16[32,128], index: 1, kind: input, shape index: {}]
  %s2 = inlined_call_operand.vmem [shape: f32[1,128], index: 2, kind: input, shape index: {}]
  %s3 = inlined_call_operand.vmem [shape: bf16[2,128,16], index: 3, kind: output, shape index: {}]
  %s4 = sld [smem:[#allocation0]]
  $region53: #{tpu_custom_call.1} parent=0
    _
  %s6 = ssub.s32 1, %s4
  %s7 = scalar_select 0, %s6, %s4
  $region1: #{tpu_custom_call.1} parent=0
    #allocation2 [shape = 'u8[8192]{0}', space=vmem, size = 0x2000, scoped, tag = 'input window, operand 0']
    #allocation3 [shape = 's32[2]{0}', space=sflag, size = 0x8, scoped, tag = 'scoped memory for tpu_custom_call.1']
    #allocation4 [shape = 'u8[8192]{0}', space=vmem, size = 0x2000, scoped, tag = 'input window, operand 1, single buffered']
    #allocation5 [shape = 's32[1]{0}', space=sflag, size = 0x4, scoped, tag = 'scoped memory for tpu_custom_call.1']
    %8 = vsyncpa [#allocation3], 0
    %s9 = scalar_lea.sflag [#allocation3], 1
    %10 = vsyncpa %s9, 0
    %11 = vsyncpa [#allocation5], 0
    loop: start=0, step=1, limit=4
    $region2: #{tpu_custom_call.1} parent=1 // loop_pre_header
      _
    $region3: #{tpu_custom_call.1} parent=1 // loop_header
      %s13 = sphi 0, %s17
      %p14 = scmp.ge.s32.totalorder %s13, 4
      %s20 = sphi 0, %s32
      %s21 = sphi 0, %s28
      %s22 = sphi 0, %s20
      %s23 = sphi 0, %s21
      %s24 = sphi 0, %s22
      %s25 = sphi 0, %s23
      %s37 = sphi 0, %s39
      %s40 = sphi 0, %s37
      %s41 = sphi 0, %s40
      %s57 = sphi 0, %s41
      %s61 = sphi 0, %s61
      %s63 = sphi 0, %s61
      %s64 = sphi 0, %s63
      %s78 = sphi 0, %s64
      %s82 = sphi 0, %s82
      %s84 = sphi 0, %s82
      %s85 = sphi 0, %s84
      %s99 = sphi 0, %s85
      %s107 = sphi 0, %s109
      %s110 = sphi 0, %s107
      %s111 = sphi 0, %s110
      %s127 = sphi 0, %s111
    $region4: #{tpu_custom_call.1} parent=1 // loop_header_branch
      %16 = sbr.rel (%p14) target = $region8
    $region5: #{tpu_custom_call.1} parent=1 // loop_body
      %s18 = ssub.s32 %s13, 1
      %s19 = ssub.s32 %s13, 2
      %s26 = sadd.s32 1, %s21
      %p27 = scmp.ge.s32.totalorder %s26, 1
      %s28 = scalar_select %p27, 0, %s26
      %s29 = sadd.s32 1, %s20
      %s30 = scalar_select %p27, %s29, %s20
      %p31 = scmp.ge.s32.totalorder %s30, 2
      %s32 = scalar_select %p31, 0, %s30
      %s33 = ssub.s32 %s20, %s32
      %s34 = ssub.s32 %s21, %s28
      %s35 = sor.u32 %s33, %s34
      %p36 = scmp.eq.s32.totalorder %s35, 0
      %s38 = sadd.s32 %s37, 1
      %s39 = scalar_select %p36, %s37, %s38
      %p42 = pneg %p36
      %p43 = scmp.eq.s32.totalorder %s13, 1
      %p44 = por %p42, %p43
      %p45 = scmp.ne.s32.totalorder %s37, %s40
      %p46 = scmp.eq.s32.totalorder %s13, 0
      %p47 = por %p45, %p46
      %p48 = scmp.ne.s32.totalorder %s37, %s40
      %p49 = scmp.eq.s32.totalorder %s18, 1
      %p50 = por %p48, %p49
      %p51 = scmp.ne.s32.totalorder %s40, %s41
      %p52 = scmp.eq.s32.totalorder %s18, 0
      %p53 = por %p51, %p52
      %p54 = scmp.ne.s32.totalorder %s40, %s41
      %p55 = scmp.eq.s32.totalorder %s19, 1
      %p56 = por %p54, %p55
      %p58 = scmp.ne.s32.totalorder %s41, %s57
      %p59 = scmp.eq.s32.totalorder %s19, 0
      %p60 = por %p58, %p59
      %s62 = sadd.s32 %s61, 1
      %p65 = scmp.eq.s32.totalorder %s13, 1
      %p66 = scmp.ne.s32.totalorder %s61, %s63
      %p67 = scmp.eq.s32.totalorder %s13, 0
      %p68 = por %p66, %p67
      %p69 = scmp.ne.s32.totalorder %s61, %s63
      %p70 = scmp.eq.s32.totalorder %s18, 1
      %p71 = por %p69, %p70
      %p72 = scmp.ne.s32.totalorder %s63, %s64
      %p73 = scmp.eq.s32.totalorder %s18, 0
      %p74 = por %p72, %p73
      %p75 = scmp.ne.s32.totalorder %s63, %s64
      %p76 = scmp.eq.s32.totalorder %s19, 1
      %p77 = por %p75, %p76
      %p79 = scmp.ne.s32.totalorder %s64, %s78
      %p80 = scmp.eq.s32.totalorder %s19, 0
      %p81 = por %p79, %p80
      %s83 = sadd.s32 %s82, 1
      %p86 = scmp.eq.s32.totalorder %s13, 1
      %p87 = scmp.ne.s32.totalorder %s82, %s84
      %p88 = scmp.eq.s32.totalorder %s13, 0
      %p89 = por %p87, %p88
      %p90 = scmp.ne.s32.totalorder %s82, %s84
      %p91 = scmp.eq.s32.totalorder %s18, 1
      %p92 = por %p90, %p91
      %p93 = scmp.ne.s32.totalorder %s84, %s85
      %p94 = scmp.eq.s32.totalorder %s18, 0
      %p95 = por %p93, %p94
      %p96 = scmp.ne.s32.totalorder %s84, %s85
      %p97 = scmp.eq.s32.totalorder %s19, 1
      %p98 = por %p96, %p97
      %p100 = scmp.ne.s32.totalorder %s85, %s99
      %p101 = scmp.eq.s32.totalorder %s19, 0
      %p102 = por %p100, %p101
      %s103 = ssub.s32 %s20, %s32
      %s104 = ssub.s32 %s21, %s28
      %s105 = sor.u32 %s103, %s104
      %p106 = scmp.eq.s32.totalorder %s105, 0
      %s108 = sadd.s32 %s107, 1
      %s109 = scalar_select %p106, %s107, %s108
      %p112 = pneg %p106
      %p113 = scmp.eq.s32.totalorder %s13, 1
      %p114 = por %p112, %p113
      %p115 = scmp.ne.s32.totalorder %s107, %s110
      %p116 = scmp.eq.s32.totalorder %s13, 0
      %p117 = por %p115, %p116
      %p118 = scmp.ne.s32.totalorder %s107, %s110
      %p119 = scmp.eq.s32.totalorder %s18, 1
      %p120 = por %p118, %p119
      %p121 = scmp.ne.s32.totalorder %s110, %s111
      %p122 = scmp.eq.s32.totalorder %s18, 0
      %p123 = por %p121, %p122
      %p124 = scmp.ne.s32.totalorder %s110, %s111
      %p125 = scmp.eq.s32.totalorder %s19, 1
      %p126 = por %p124, %p125
      %p128 = scmp.ne.s32.totalorder %s111, %s127
      %p129 = scmp.eq.s32.totalorder %s19, 0
      %p130 = por %p128, %p129
      %p131 = scmp.le.s32.totalorder 1, %s13
      %p132 = scmp.lt.s32.totalorder %s13, 3
      %p133 = pnand %p131, %p132
      %p134 = pneg %p133
      // Predicated region
      $region9: #{tpu_custom_call.1} parent=5 // pred_check
        _
      $region10: #{tpu_custom_call.1} parent=5 // pred_check_branch
        %136 = sbr.rel (%p133) target = $region12
      $region11: #{tpu_custom_call.1} parent=5 // pred_region
        %s137 = ssub.s32 %s13, 1
        // Predicated region
        $region13: #{tpu_custom_call.1} parent=11 // pred_check
          %p138 = pneg %p74
        $region14: #{tpu_custom_call.1} parent=11 // pred_check_branch
          %140 = sbr.rel (%p138) target = $region16
        $region15: #{tpu_custom_call.1} parent=11 // pred_region
          %s142 = ssub.s32 256, 256
          %143 = vsyncadd [#allocation5], %s142
          %s144 = sshll.u32 [#allocation4], 4
          %s145 = int_to_ptr.vmem [resolvable:$true] %s144
          %150 = dma.hbm_to_vmem [thread:$0]  %s1, 256, %s145, [#allocation5], 64, 64, 4
        $region16: #{tpu_custom_call.1} parent=11 // pred_fallthru
          _
        // Predicated region
        $region17: #{tpu_custom_call.1} parent=11 // pred_check
          %p151 = pneg %p95
        $region18: #{tpu_custom_call.1} parent=11 // pred_check_branch
          %153 = sbr.rel (%p151) target = $region20
        $region19: #{tpu_custom_call.1} parent=11 // pred_region
          _
        $region20: #{tpu_custom_call.1} parent=11 // pred_fallthru
          _
      $region12: #{tpu_custom_call.1} parent=5 // pred_fallthru
        _
      %p154 = scmp.lt.s32.totalorder %s13, 2
      // Predicated region
      $region21: #{tpu_custom_call.1} parent=5 // pred_check
        %p155 = pneg %p154
      $region22: #{tpu_custom_call.1} parent=5 // pred_check_branch
        %157 = sbr.rel (%p155) target = $region24
      $region23: #{tpu_custom_call.1} parent=5 // pred_region
        // Predicated region
        $region25: #{tpu_custom_call.1} parent=23 // pred_check
          %p158 = pneg %p47
        $region26: #{tpu_custom_call.1} parent=23 // pred_check_branch
          %160 = sbr.rel (%p158) target = $region28
        $region27: #{tpu_custom_call.1} parent=23 // pred_region
          %s161 = sand.u32 %s37, 1
          %s162 = scalar_lea.sflag [#allocation3], %s161
          %s163 = sand.u32 %s37, 1
          %s164 = smul.addr %s163, 8
          %s165 = scalar_lea.vmem [#allocation2], %s164
          %s166 = smul.u32 2, %s21
          %s168 = ssub.s32 128, 128
          %169 = vsyncadd %s162, %s168
          %s170 = smul.addr %s20, 2
          %s171 = sadd.s32 %s166, %s170
          %s172 = smul.addr %s171, 64
          %s173 = scalar_lea.hbm %s0, %s172
          %s174 = sshll.u32 %s165, 4
          %s175 = int_to_ptr.vmem [resolvable:$true] %s174
          %180 = dma.hbm_to_vmem [thread:$0]  %s173, 128, %s175, %s162, 64, 64, 4
        $region28: #{tpu_custom_call.1} parent=23 // pred_fallthru
          _
      $region24: #{tpu_custom_call.1} parent=5 // pred_fallthru
        _
      %p181 = scmp.le.s32.totalorder 1, %s13
      %p182 = scmp.lt.s32.totalorder %s13, 3
      %p183 = pnand %p181, %p182
      %p184 = pneg %p183
      // Predicated region
      $region29: #{tpu_custom_call.1} parent=5 // pred_check
        _
      $region30: #{tpu_custom_call.1} parent=5 // pred_check_branch
        %186 = sbr.rel (%p183) target = $region32
      $region31: #{tpu_custom_call.1} parent=5 // pred_region
        %s187 = ssub.s32 %s13, 1
        %s188 = sand.u32 %s40, 1
        %s189 = scalar_lea.sflag [#allocation3], %s188
        %s190 = sand.u32 %s40, 1
        %s191 = smul.addr %s190, 8
        %s192 = scalar_lea.vmem [#allocation2], %s191
        // Predicated region
        $region33: #{tpu_custom_call.1} parent=31 // pred_check
          %p193 = pneg %p53
        $region34: #{tpu_custom_call.1} parent=31 // pred_check_branch
          %195 = sbr.rel (%p193) target = $region36
        $region35: #{tpu_custom_call.1} parent=31 // pred_region
          %196 = dma.done %s189, 128
        $region36: #{tpu_custom_call.1} parent=31 // pred_fallthru
          _
        // Predicated region
        $region37: #{tpu_custom_call.1} parent=31 // pred_check
          %p197 = pneg %p74
        $region38: #{tpu_custom_call.1} parent=31 // pred_check_branch
          %199 = sbr.rel (%p197) target = $region40
        $region39: #{tpu_custom_call.1} parent=31 // pred_region
          %200 = dma.done [#allocation5], 256
        $region40: #{tpu_custom_call.1} parent=31 // pred_fallthru
          _
        %s201 = sand.u32 %s40, 1
        %s202 = scalar_lea.sflag [#allocation3], %s201
        %s203 = sand.u32 %s40, 1
        %s204 = smul.addr %s203, 8
        %s205 = scalar_lea.vmem [#allocation2], %s204
        %p206 = pneg %p53
        %p207 = pneg %p50
        %p208 = pneg %p74
        %p209 = pneg %p71
        %p210 = pneg %p95
        %p211 = pneg %p92
        %p212 = pneg %p123
        %p213 = pneg %p120
        %p214 = scmp.lt.s32.totalorder %s22, 1
        %s215 = scalar_select %p214, %s22, 1
        %p216 = scmp.lt.s32.totalorder %s23, 0
        %s217 = scalar_select %p216, %s23, 0
        %s218 = smul.addr %s215, 16
        %s219 = sadd.s32 %s217, %s218
        %s220 = smul.addr %s219, 4
        %s221 = scalar_lea.vmem %s3, %s220
        %s222 = smul.u32 2, %s23
        %p223 = scmp.lt.s32.totalorder %s22, 1
        %s224 = scalar_select %p223, %s22, 1
        %p225 = scmp.lt.s32.totalorder %s23, 0
        %s226 = scalar_select %p225, %s23, 0
        %s227 = smul.addr %s224, 16
        %s228 = sadd.s32 %s226, %s227
        %s229 = smul.addr %s228, 4
        %s230 = scalar_lea.vmem %s3, %s229
        %v232 = vld [vmem:[%s192] sm:$0xf]
        %v233 = vld [vmem:[%s192 + $0x4] sm:$0xf]
        %v234 = vld [vmem:[#allocation4] sm:$0xf]
        %v235 = vld [vmem:[#allocation4 + $0x4] sm:$0xf]
        %v236 = vld [vmem:[#allocation4 + $0x8] sm:$0xf]
        %v237 = vld [vmem:[#allocation4 + $0xc] sm:$0xf]
        %v238 = vld [vmem:[%s2] sm:$0x1]
        %v240 = vlaneseq
        %v241 = vshrl.u32 %v240, 7
        %v242 = vsub.s32 0, %v241
        %v243 = vrot.slane %v238, %v242
        %v247 = vunpack.c.l.b16 %v232
        %v248 = vunpack.c.l.b16 %v233
        %v249 = vpack.c.b16 %v248, %v247
        %v254 = vunpack.c.l.b16 %v234
        %v255 = vunpack.c.l.b16 %v235
        %v256 = vunpack.c.l.b16 %v236
        %v257 = vunpack.c.l.b16 %v237
        %v258 = vpack.c.b16 %v255, %v254
        %v259 = vpack.c.b16 %v257, %v256
        %vm262 = vcmask 261120
        %v264 = vsel %vm262, %v249, 0
        %266 = vmatprep.subr.bf16.mxu0 0
        %267 = vmatpush1.bf16.msra.mxu0 %v258
        %268 = vmatprep.subr.bf16.mxu0 0
        %269 = vmatpush1.bf16.msra.mxu0 %v259
        %270 = vmatprep.subr.bf16.mxu0 0
        %271 = vmatpush1.bf16.msra.mxu0 0
        %272 = vmatprep.subr.bf16.mxu0 0
        %273 = vmatpush1.bf16.msra.mxu0 0
        %274 = vmatprep.subr.bf16.mxu0 0
        %275 = vmatpush1.bf16.msra.mxu0 0
        %276 = vmatprep.subr.bf16.mxu0 0
        %277 = vmatpush1.bf16.msra.mxu0 0
        %278 = vmatprep.subr.bf16.mxu0 0
        %279 = vmatpush1.bf16.msra.mxu0 0
        %280 = vmatprep.subr.bf16.mxu0 0
        %281 = vmatpush1.bf16.msra.mxu0 0
        %282 = vmatprep.subr.bf16.mxu0 0
        %283 = vmatpush1.bf16.msra.mxu0 0
        %284 = vmatprep.subr.bf16.mxu0 0
        %285 = vmatpush1.bf16.msra.mxu0 0
        %286 = vmatprep.subr.bf16.mxu0 0
        %287 = vmatpush1.bf16.msra.mxu0 0
        %288 = vmatprep.subr.bf16.mxu0 0
        %289 = vmatpush1.bf16.msra.mxu0 0
        %290 = vmatprep.subr.bf16.mxu0 0
        %291 = vmatpush1.bf16.msra.mxu0 0
        %292 = vmatprep.subr.bf16.mxu0 0
        %293 = vmatpush1.bf16.msra.mxu0 0
        %294 = vmatprep.subr.bf16.mxu0 0
        %295 = vmatpush1.bf16.msra.mxu0 0
        %296 = vmatprep.subr.bf16.mxu0 0
        %297 = vmatpush1.bf16.msra.mxu0 0
        %298 = vmatprep.mubr.bf16.mxu0 0
        %299 = vmatmul.mubr.bf16.gmra.mrb[0].mxu0 %v264
        %v300 = vpop.f32.mrb[0].mxu0
        %v301 = vadd.f32 %v243, %v300
        %v302 = vpop.f32.mrb[0].mxu0
        %v303 = vpop.f32.mrb[0].mxu0
        %v304 = vadd.f32 %v243, %v303
        %v305 = vpop.f32.mrb[0].mxu0
        %306 = vdwg.mxu0
        %307 = vxpose.xlu0.b32.start [1/16] %v301, 128
        %308 = vxpose.xlu0.b32.cont [2/16] %v304, 128
        %309 = vxpose.xlu0.b32.cont [3/16] 0.0, 128
        %310 = vxpose.xlu0.b32.cont [4/16] 0.0, 128
        %311 = vxpose.xlu0.b32.cont [5/16] 0.0, 128
        %312 = vxpose.xlu0.b32.cont [6/16] 0.0, 128
        %313 = vxpose.xlu0.b32.cont [7/16] 0.0, 128
        %314 = vxpose.xlu0.b32.cont [8/16] 0.0, 128
        %315 = vxpose.xlu0.b32.cont [9/16] 0.0, 128
        %316 = vxpose.xlu0.b32.cont [10/16] 0.0, 128
        %317 = vxpose.xlu0.b32.cont [11/16] 0.0, 128
        %318 = vxpose.xlu0.b32.cont [12/16] 0.0, 128
        %319 = vxpose.xlu0.b32.cont [13/16] 0.0, 128
        %320 = vxpose.xlu0.b32.cont [14/16] 0.0, 128
        %321 = vxpose.xlu0.b32.cont [15/16] 0.0, 128
        %322 = vxpose.xlu0.b32.end [16/16] 0.0, 128
        %v323 = vpop.trf.xlu0
        %v324 = vpop.trf.xlu0
        %v325 = vpop.trf.xlu0
        %v326 = vpop.trf.xlu0
        %v327 = vpop.trf.xlu0
        %v328 = vpop.trf.xlu0
        %v329 = vpop.trf.xlu0
        %v330 = vpop.trf.xlu0
        %v331 = vpop.trf.xlu0
        %v332 = vpop.trf.xlu0
        %v333 = vpop.trf.xlu0
        %v334 = vpop.trf.xlu0
        %v335 = vpop.trf.xlu0
        %v336 = vpop.trf.xlu0
        %v337 = vpop.trf.xlu0
        %v338 = vpop.trf.xlu0
        %v339 = vpack.c.bf16 %v324, %v323
        %v340 = vpack.c.bf16 %v326, %v325
        %v341 = vpack.c.bf16 %v328, %v327
        %v342 = vpack.c.bf16 %v330, %v329
        %v343 = vpack.c.bf16 %v332, %v331
        %v344 = vpack.c.bf16 %v334, %v333
        %v345 = vpack.c.bf16 %v336, %v335
        %v346 = vpack.c.bf16 %v338, %v337
        %v355 = vunpack.c.l.b16 %v339
        %v356 = vunpack.c.h.b16 %v339
        %v357 = vunpack.c.l.b16 %v340
        %v358 = vunpack.c.h.b16 %v340
        %v359 = vunpack.c.l.b16 %v341
        %v360 = vunpack.c.h.b16 %v341
        %v361 = vunpack.c.l.b16 %v342
        %v362 = vunpack.c.h.b16 %v342
        %v363 = vunpack.c.l.b16 %v343
        %v364 = vunpack.c.h.b16 %v343
        %v365 = vunpack.c.l.b16 %v344
        %v366 = vunpack.c.h.b16 %v344
        %v367 = vunpack.c.l.b16 %v345
        %v368 = vunpack.c.h.b16 %v345
        %v369 = vunpack.c.l.b16 %v346
        %v370 = vunpack.c.h.b16 %v346
        %v371 = vpack.c.b16 %v355, %v355
        %v372 = vpack.c.b16 %v356, %v356
        %v373 = vpack.c.b16 %v357, %v357
        %v374 = vpack.c.b16 %v358, %v358
        %v375 = vpack.c.b16 %v359, %v359
        %v376 = vpack.c.b16 %v360, %v360
        %v377 = vpack.c.b16 %v361, %v361
        %v378 = vpack.c.b16 %v362, %v362
        %v379 = vpack.c.b16 %v363, %v363
        %v380 = vpack.c.b16 %v364, %v364
        %v381 = vpack.c.b16 %v365, %v365
        %v382 = vpack.c.b16 %v366, %v366
        %v383 = vpack.c.b16 %v367, %v367
        %v384 = vpack.c.b16 %v368, %v368
        %v385 = vpack.c.b16 %v369, %v369
        %v386 = vpack.c.b16 %v370, %v370
        %vm403 = vcmask 125952
        %404 = vst.msk [vmem:[%s230] sm:$0xf] %vm403, %v371
        %405 = vst.msk [vmem:[%s230 + $0x4] sm:$0xf] %vm403, %v372
        %406 = vst.msk [vmem:[%s230 + $0x8] sm:$0xf] %vm403, %v373
        %407 = vst.msk [vmem:[%s230 + $0xc] sm:$0xf] %vm403, %v374
        %408 = vst.msk [vmem:[%s230 + $0x10] sm:$0xf] %vm403, %v375
        %409 = vst.msk [vmem:[%s230 + $0x14] sm:$0xf] %vm403, %v376
        %410 = vst.msk [vmem:[%s230 + $0x18] sm:$0xf] %vm403, %v377
        %411 = vst.msk [vmem:[%s230 + $0x1c] sm:$0xf] %vm403, %v378
        %412 = vst.msk [vmem:[%s230 + $0x20] sm:$0xf] %vm403, %v379
        %413 = vst.msk [vmem:[%s230 + $0x24] sm:$0xf] %vm403, %v380
        %414 = vst.msk [vmem:[%s230 + $0x28] sm:$0xf] %vm403, %v381
        %415 = vst.msk [vmem:[%s230 + $0x2c] sm:$0xf] %vm403, %v382
        %416 = vst.msk [vmem:[%s230 + $0x30] sm:$0xf] %vm403, %v383
        %417 = vst.msk [vmem:[%s230 + $0x34] sm:$0xf] %vm403, %v384
        %418 = vst.msk [vmem:[%s230 + $0x38] sm:$0xf] %vm403, %v385
        %419 = vst.msk [vmem:[%s230 + $0x3c] sm:$0xf] %vm403, %v386
        %p420 = scmp.lt.s32.totalorder %s22, 1
        %s421 = scalar_select %p420, %s22, 1
        %p422 = scmp.lt.s32.totalorder %s23, 0
        %s423 = scalar_select %p422, %s23, 0
        %s424 = smul.addr %s421, 16
        %s425 = sadd.s32 %s423, %s424
        %s426 = smul.addr %s425, 4
        %s427 = scalar_lea.vmem %s3, %s426
        // Predicated region
        $region41: #{tpu_custom_call.1} parent=31 // pred_check
          %p428 = pneg %p120
        $region42: #{tpu_custom_call.1} parent=31 // pred_check_branch
          %430 = sbr.rel (%p428) target = $region44
        $region43: #{tpu_custom_call.1} parent=31 // pred_region
          _
        $region44: #{tpu_custom_call.1} parent=31 // pred_fallthru
          _
      $region32: #{tpu_custom_call.1} parent=5 // pred_fallthru
        _
      %p431 = scmp.le.s32.totalorder 2, %s13
      // Predicated region
      $region45: #{tpu_custom_call.1} parent=5 // pred_check
        %p432 = pneg %p431
      $region46: #{tpu_custom_call.1} parent=5 // pred_check_branch
        %434 = sbr.rel (%p432) target = $region48
      $region47: #{tpu_custom_call.1} parent=5 // pred_region
        %s435 = ssub.s32 %s13, 2
        // Predicated region
        $region49: #{tpu_custom_call.1} parent=47 // pred_check
          %p436 = pneg %p126
        $region50: #{tpu_custom_call.1} parent=47 // pred_check_branch
          %438 = sbr.rel (%p436) target = $region52
        $region51: #{tpu_custom_call.1} parent=47 // pred_region
          %p439 = scmp.lt.s32.totalorder %s24, 1
          %s440 = scalar_select %p439, %s24, 1
          %p441 = scmp.lt.s32.totalorder %s25, 0
          %s442 = scalar_select %p441, %s25, 0
          %s443 = smul.addr %s440, 16
          %s444 = sadd.s32 %s442, %s443
          %s445 = smul.addr %s444, 4
          %s446 = scalar_lea.vmem %s3, %s445
        $region52: #{tpu_custom_call.1} parent=47 // pred_fallthru
          _
      $region48: #{tpu_custom_call.1} parent=5 // pred_fallthru
        _
    $region6: #{tpu_custom_call.1} parent=1 // loop_footer
      %s17 = sadd.s32 1, %s13
    $region7: #{tpu_custom_call.1} parent=1 // loop_footer_branch
      %12 = sbr.rel target = $region3
    $region8: #{tpu_custom_call.1} parent=1 // loop_exit
      _
    %447 = vsyncpa [#allocation3], 1
    %s448 = scalar_lea.sflag [#allocation3], 1
    %449 = vsyncpa %s448, 1
    %450 = vsyncpa [#allocation5], 1

</llo_original>
